<compile_context>
chip_gen: v6e
topology: v6e:2x2x1
jax: 0.10.0
libtpu: 0.0.40
codegen_flags: <defaults>
</compile_context>

<pallas_src>
import functools

import jax
import jax.numpy as jnp
from jax.experimental import pallas as pl
from jax.experimental.pallas import tpu as pltpu

LANE = 128      # vreg lane width
SUBLANE = 8     # vreg sublane count (f32)


def _round_up(x, m):
    return (x + m - 1) // m * m


# ----------------------------- Pallas kernel ------------------------------- #
def wgail_policy_kernel(obs_ref, w1_ref, b1_ref, w2_ref, b2_ref, w3_ref, b3_ref,
                        out_ref, *, action_dim, compute_dtype):
    """MLP + masked softmax for one (TILE_B, obs_dim) batch tile."""

    def dense(x, w_ref, b_ref):
        # MXU matmul in compute_dtype (f32 or bf16), f32 accumulation,
        # f32 bias add / elementwise (v5e VPU/EUP have no bf16).
        lhs = x.astype(compute_dtype)
        rhs = w_ref[...].astype(compute_dtype)
        return jnp.dot(lhs, rhs, preferred_element_type=jnp.float32) + b_ref[...]

    x = obs_ref[...]                                            # (TILE_B, obs_dim)
    h1 = jnp.maximum(dense(x, w1_ref, b1_ref), 0.0)             # (TILE_B, 64)
    h2 = jnp.maximum(dense(h1, w2_ref, b2_ref), 0.0)            # (TILE_B, 64)
    logits = dense(h2, w3_ref, b3_ref)                          # (TILE_B, PAD_A)

    # Mask padded action lanes so softmax reductions only see real logits.
    col = jax.lax.broadcasted_iota(jnp.int32, logits.shape, dimension=1)
    logits = jnp.where(col < action_dim, logits, -1e30)

    # Numerically-stable softmax over the (padded) action dimension.
    # Exact normalization (f32 divide) so each row sums to 1 to f32 precision;
    # the approx-reciprocal EUP path is not accurate enough for a probability
    # simplex and this op is nowhere near the bottleneck of the kernel.
    m = jnp.max(logits, axis=1, keepdims=True)
    e = jnp.exp(logits - m)                                     # pad lanes -> 0
    denom = jnp.sum(e, axis=1, keepdims=True)
    out_ref[...] = (e / denom).astype(out_ref.dtype)


# ------------------------------- Wrapper ------------------------------------ #
def wgail_policy_forward(obs, params, *, tile_b=256, compute_dtype=jnp.float32):
    """obs: (B, obs_dim) f32. params: dict of transposed (in,out) weights / (1,out) biases."""
    B, obs_dim = obs.shape
    hidden = params["w1"].shape[1]
    action_dim = params["w3"].shape[1]

    # Lane-dense output width (>= 128, multiple of 128).
    pad_a = _round_up(max(action_dim, LANE), LANE)

    # Batch tile: multiple of 8 sublanes, no larger than the padded batch.
    tile_b = max(SUBLANE, min(tile_b, _round_up(B, SUBLANE)))
    b_pad = _round_up(B, tile_b)

    obs_p = obs if b_pad == B else jnp.pad(obs, ((0, b_pad - B), (0, 0)))

    # Zero-pad final-layer weight/bias to the lane-dense width (masked in-kernel).
    w3, b3 = params["w3"], params["b3"]
    if pad_a != action_dim:
        w3 = jnp.pad(w3, ((0, 0), (0, pad_a - action_dim)))
        b3 = jnp.pad(b3, ((0, 0), (0, pad_a - action_dim)))

    grid = (b_pad // tile_b,)

    def resident(shape):
        # Constant block index -> the array stays resident in VMEM across grid steps.
        return pl.BlockSpec(shape, lambda i: (0, 0))

    kernel = functools.partial(
        wgail_policy_kernel, action_dim=action_dim, compute_dtype=compute_dtype)

    itemsize = 2 if compute_dtype == jnp.bfloat16 else 4
    flops = 2 * b_pad * (obs_dim * hidden + hidden * hidden + hidden * pad_a)
    bytes_accessed = (
        b_pad * obs_dim * 4 + b_pad * pad_a * 4                   # obs in, probs out
        + (obs_dim * hidden + hidden * hidden + hidden * pad_a) * itemsize
        + (2 * hidden + pad_a) * 4)                               # biases
    cost = pl.CostEstimate(flops=flops,
                           transcendentals=b_pad * pad_a,
                           bytes_accessed=bytes_accessed)

    out = pl.pallas_call(
        kernel,
        out_shape=jax.ShapeDtypeStruct((b_pad, pad_a), jnp.float32),
        grid=grid,
        in_specs=[
            pl.BlockSpec((tile_b, obs_dim), lambda i: (i, 0)),    # obs: tiled on batch
            resident(params["w1"].shape),
            resident(params["b1"].shape),
            resident(params["w2"].shape),
            resident(params["b2"].shape),
            resident(w3.shape),
            resident(b3.shape),
        ],
        out_specs=pl.BlockSpec((tile_b, pad_a), lambda i: (i, 0)),
        compiler_params=pltpu.CompilerParams(
            dimension_semantics=("parallel",)),                   # megacore split on v7x
        cost_estimate=cost,
    )(obs_p, params["w1"], params["b1"], params["w2"], params["b2"], w3, b3)

    return out[:B, :action_dim]


# ------------------------- Deterministic init ------------------------------- #
def orthogonal_init(key, rows, cols):
    """Mimic torch.nn.init.orthogonal_ for a (rows, cols) weight matrix."""
    big, small = max(rows, cols), min(rows, cols)
    a = jax.random.normal(key, (big, small), dtype=jnp.float32)
    q, r = jnp.linalg.qr(a)
    q = q * jnp.sign(jnp.diag(r))
    if rows < cols:
        q = q.T
    return q[:rows, :cols]


def make_params(key, obs_dim, hidden, action_dim):
    ks = jax.random.split(key, 6)
    # PyTorch weights are (out, in); we store them transposed (in, out).
    w1 = orthogonal_init(ks[0], hidden, obs_dim).T
    w2 = orthogonal_init(ks[1], hidden, hidden).T
    w3 = orthogonal_init(ks[2], action_dim, hidden).T
    # Biases: deterministic small uniform (PyTorch default is U(-1/sqrt(fan_in), ...)).
    b1 = jax.random.uniform(ks[3], (1, hidden), minval=-1.0, maxval=1.0) / jnp.sqrt(obs_dim)
    b2 = jax.random.uniform(ks[4], (1, hidden), minval=-1.0, maxval=1.0) / jnp.sqrt(hidden)
    b3 = jax.random.uniform(ks[5], (1, action_dim), minval=-1.0, maxval=1.0) / jnp.sqrt(hidden)
    return {"w1": w1, "b1": b1, "w2": w2, "b2": b2, "w3": w3, "b3": b3}


def reference_forward(obs, p):
    h1 = jnp.maximum(obs @ p["w1"] + p["b1"], 0.0)
    h2 = jnp.maximum(h1 @ p["w2"] + p["b2"], 0.0)
    logits = h2 @ p["w3"] + p["b3"]
    return jax.nn.softmax(logits, axis=1)


# --------------------------------- Main -------------------------------------- #
if __name__ == "__main__":
    # Small synthetic env: Discrete(6) action space, obs space of shape (16,)
    OBS_DIM = 16     # int(np.prod(observation_space.shape))
    HIDDEN = 64      # net_arch = [64, 64] for Discrete action spaces
    ACTION_DIM = 6   # env.action_space.n
    BATCH = 2

    key = jax.random.PRNGKey(0)
    k_obs, k_params = jax.random.split(key)

    obs = jax.random.normal(k_obs, (BATCH, OBS_DIM), dtype=jnp.float32)
    params = make_params(k_params, OBS_DIM, HIDDEN, ACTION_DIM)
    ref = reference_forward(obs, params)

    # f32 compute path (matches the PyTorch module numerics).
    out = jax.block_until_ready(wgail_policy_forward(obs, params))
    assert out.shape == (BATCH, ACTION_DIM)
    assert jnp.allclose(out, ref, atol=1e-3, rtol=1e-3), "f32 mismatch vs. reference"
    assert jnp.allclose(jnp.sum(out, axis=1), 1.0, atol=1e-3), "softmax rows must sum to 1"

    # bf16-matmul fast path (v6e/v7x MXU), f32 accumulation / elementwise / softmax.
    out_bf16 = jax.block_until_ready(
        wgail_policy_forward(obs, params, compute_dtype=jnp.bfloat16))
    assert out_bf16.shape == (BATCH, ACTION_DIM)
    assert jnp.allclose(out_bf16, ref, atol=5e-2, rtol=5e-2), "bf16 mismatch vs. reference"
    assert jnp.allclose(jnp.sum(out_bf16, axis=1), 1.0, atol=1e-3), "bf16 softmax rows must sum to 1"

    print("KERNEL_OK")
</pallas_src>

<mosaic_0001>
module attributes {stable_mosaic.version = 11 : i64} {
  func.func @wgail_policy_kernel(%arg0: i32, %arg1: memref<8x16xf32, #tpu.memory_space<vmem>>, %arg2: memref<16x64xf32, #tpu.memory_space<vmem>>, %arg3: memref<1x64xf32, #tpu.memory_space<vmem>>, %arg4: memref<64x64xf32, #tpu.memory_space<vmem>>, %arg5: memref<1x64xf32, #tpu.memory_space<vmem>>, %arg6: memref<64x128xf32, #tpu.memory_space<vmem>>, %arg7: memref<1x128xf32, #tpu.memory_space<vmem>>, %arg8: memref<8x128xf32, #tpu.memory_space<vmem>>) attributes {dimension_semantics = [#tpu.dimension_semantics<parallel>], iteration_bounds = array<i64: 1>, scalar_prefetch = 0 : i64, scratch_operands = 0 : i64, tpu.core_type = #tpu.core_type<tc>, window_params = [{transform_indices = @transform_0, window_bounds = array<i64: 8, 16>}, {pipeline_mode = #tpu.pipeline_mode<synchronous>, transform_indices = @transform_1, window_bounds = array<i64: 16, 64>}, {pipeline_mode = #tpu.pipeline_mode<synchronous>, transform_indices = @transform_2, window_bounds = array<i64: 1, 64>}, {pipeline_mode = #tpu.pipeline_mode<synchronous>, transform_indices = @transform_3, window_bounds = array<i64: 64, 64>}, {pipeline_mode = #tpu.pipeline_mode<synchronous>, transform_indices = @transform_4, window_bounds = array<i64: 1, 64>}, {pipeline_mode = #tpu.pipeline_mode<synchronous>, transform_indices = @transform_5, window_bounds = array<i64: 64, 128>}, {pipeline_mode = #tpu.pipeline_mode<synchronous>, transform_indices = @transform_6, window_bounds = array<i64: 1, 128>}, {transform_indices = @transform_7, window_bounds = array<i64: 8, 128>}]} {
    %c0 = arith.constant 0 : index
    %c0_0 = arith.constant 0 : index
    %0 = vector.load %arg1[%c0, %c0_0] : memref<8x16xf32, #tpu.memory_space<vmem>>, vector<8x16xf32>
    %c0_1 = arith.constant 0 : index
    %c0_2 = arith.constant 0 : index
    %1 = vector.load %arg2[%c0_1, %c0_2] : memref<16x64xf32, #tpu.memory_space<vmem>>, vector<16x64xf32>
    %cst = arith.constant dense<0.000000e+00> : vector<8x64xf32>
    %2 = tpu.matmul %0, %1, %cst {dimension_numbers = #tpu.dot_dimension_numbers<[1], [0], [0], [1], [0, 0, 1, 1], [], []>} : vector<8x16xf32>, vector<16x64xf32>, vector<8x64xf32> -> vector<8x64xf32>
    %c0_3 = arith.constant 0 : index
    %c0_4 = arith.constant 0 : index
    %3 = vector.load %arg3[%c0_3, %c0_4] : memref<1x64xf32, #tpu.memory_space<vmem>>, vector<1x64xf32>
    %4 = vector.broadcast %3 : vector<1x64xf32> to vector<8x64xf32>
    %5 = arith.addf %2, %4 : vector<8x64xf32>
    %cst_5 = arith.constant 0.000000e+00 : f32
    %6 = vector.broadcast %cst_5 : f32 to vector<8x64xf32>
    %7 = arith.maximumf %5, %6 : vector<8x64xf32>
    %c0_6 = arith.constant 0 : index
    %c0_7 = arith.constant 0 : index
    %8 = vector.load %arg4[%c0_6, %c0_7] : memref<64x64xf32, #tpu.memory_space<vmem>>, vector<64x64xf32>
    %cst_8 = arith.constant dense<0.000000e+00> : vector<8x64xf32>
    %9 = tpu.matmul %7, %8, %cst_8 {dimension_numbers = #tpu.dot_dimension_numbers<[1], [0], [0], [1], [0, 0, 1, 1], [], []>} : vector<8x64xf32>, vector<64x64xf32>, vector<8x64xf32> -> vector<8x64xf32>
    %c0_9 = arith.constant 0 : index
    %c0_10 = arith.constant 0 : index
    %10 = vector.load %arg5[%c0_9, %c0_10] : memref<1x64xf32, #tpu.memory_space<vmem>>, vector<1x64xf32>
    %11 = vector.broadcast %10 : vector<1x64xf32> to vector<8x64xf32>
    %12 = arith.addf %9, %11 : vector<8x64xf32>
    %cst_11 = arith.constant 0.000000e+00 : f32
    %13 = vector.broadcast %cst_11 : f32 to vector<8x64xf32>
    %14 = arith.maximumf %12, %13 : vector<8x64xf32>
    %c0_12 = arith.constant 0 : index
    %c0_13 = arith.constant 0 : index
    %15 = vector.load %arg6[%c0_12, %c0_13] : memref<64x128xf32, #tpu.memory_space<vmem>>, vector<64x128xf32>
    %cst_14 = arith.constant dense<0.000000e+00> : vector<8x128xf32>
    %16 = tpu.matmul %14, %15, %cst_14 {dimension_numbers = #tpu.dot_dimension_numbers<[1], [0], [0], [1], [0, 0, 1, 1], [], []>} : vector<8x64xf32>, vector<64x128xf32>, vector<8x128xf32> -> vector<8x128xf32>
    %c0_15 = arith.constant 0 : index
    %c0_16 = arith.constant 0 : index
    %17 = vector.load %arg7[%c0_15, %c0_16] : memref<1x128xf32, #tpu.memory_space<vmem>>, vector<1x128xf32>
    %18 = vector.broadcast %17 : vector<1x128xf32> to vector<8x128xf32>
    %19 = arith.addf %16, %18 : vector<8x128xf32>
    %20 = tpu.iota {dimensions = array<i32: 1>} : vector<8x128xi32>
    %c6_i32 = arith.constant 6 : i32
    %21 = vector.broadcast %c6_i32 : i32 to vector<8x128xi32>
    %22 = arith.cmpi slt, %20, %21 : vector<8x128xi32>
    %cst_17 = arith.constant -1.000000e+30 : f32
    %23 = vector.broadcast %cst_17 : f32 to vector<8x128xf32>
    %24 = arith.select %22, %19, %23 : vector<8x128xi1>, vector<8x128xf32>
    %cst_18 = arith.constant dense<0xFF800000> : vector<8xf32>
    %25 = vector.multi_reduction <maximumf>, %24, %cst_18 [1] : vector<8x128xf32> to vector<8xf32>
    %26 = vector.shape_cast %25 : vector<8xf32> to vector<8x1xf32>
    %27 = vector.broadcast %26 : vector<8x1xf32> to vector<8x128xf32>
    %28 = arith.subf %24, %27 : vector<8x128xf32>
    %29 = math.exp %28 : vector<8x128xf32>
    %cst_19 = arith.constant dense<0.000000e+00> : vector<8xf32>
    %30 = vector.multi_reduction <add>, %29, %cst_19 [1] : vector<8x128xf32> to vector<8xf32>
    %31 = vector.shape_cast %30 : vector<8xf32> to vector<8x1xf32>
    %32 = vector.broadcast %31 : vector<8x1xf32> to vector<8x128xf32>
    %33 = arith.divf %29, %32 : vector<8x128xf32>
    %c0_20 = arith.constant 0 : index
    %c0_21 = arith.constant 0 : index
    %34 = vector.load %arg8[%c0_20, %c0_21] : memref<8x128xf32, #tpu.memory_space<vmem>>, vector<8x128xf32>
    tpu.vector_store %arg8[%c0_20, %c0_21], %33 {strides = array<i32>} : memref<8x128xf32, #tpu.memory_space<vmem>>, vector<8x128xf32>,
    return
  }
  func.func @transform_0(%arg0: i32) -> (i32, i32) {
    %c0_i32 = arith.constant 0 : i32
    %c0_i32_0 = arith.constant 0 : i32
    return %arg0, %c0_i32 : i32, i32
  }
  func.func @transform_1(%arg0: i32) -> (i32, i32) {
    %c0_i32 = arith.constant 0 : i32
    %c0_i32_0 = arith.constant 0 : i32
    %c0_i32_1 = arith.constant 0 : i32
    return %c0_i32, %c0_i32_0 : i32, i32
  }
  func.func @transform_2(%arg0: i32) -> (i32, i32) {
    %c0_i32 = arith.constant 0 : i32
    %c0_i32_0 = arith.constant 0 : i32
    %c0_i32_1 = arith.constant 0 : i32
    return %c0_i32, %c0_i32_0 : i32, i32
  }
  func.func @transform_3(%arg0: i32) -> (i32, i32) {
    %c0_i32 = arith.constant 0 : i32
    %c0_i32_0 = arith.constant 0 : i32
    %c0_i32_1 = arith.constant 0 : i32
    return %c0_i32, %c0_i32_0 : i32, i32
  }
  func.func @transform_4(%arg0: i32) -> (i32, i32) {
    %c0_i32 = arith.constant 0 : i32
    %c0_i32_0 = arith.constant 0 : i32
    %c0_i32_1 = arith.constant 0 : i32
    return %c0_i32, %c0_i32_0 : i32, i32
  }
  func.func @transform_5(%arg0: i32) -> (i32, i32) {
    %c0_i32 = arith.constant 0 : i32
    %c0_i32_0 = arith.constant 0 : i32
    %c0_i32_1 = arith.constant 0 : i32
    return %c0_i32, %c0_i32_0 : i32, i32
  }
  func.func @transform_6(%arg0: i32) -> (i32, i32) {
    %c0_i32 = arith.constant 0 : i32
    %c0_i32_0 = arith.constant 0 : i32
    %c0_i32_1 = arith.constant 0 : i32
    return %c0_i32, %c0_i32_0 : i32, i32
  }
  func.func @transform_7(%arg0: i32) -> (i32, i32) {
    %c0_i32 = arith.constant 0 : i32
    %c0_i32_0 = arith.constant 0 : i32
    return %arg0, %c0_i32 : i32, i32
  }
}

</mosaic_0001>

<llo_original>
// kernel: tpu_custom_call.1
$region0: #{tpu_custom_call.1}
  #allocation0 [shape = 'u32[]', space=smem, size = 0x4, offset = 0x4, fixed_abs, tag = 'smem constant byte address 0x4 - core index']
  #allocation1 [shape = 'u32[144,128]{1,0:T(1,128)}', space=vmem, size = 0x12000, scoped, tag = 'internal scratch']
  %s0 = inlined_call_operand.hbm [shape: f32[8,16], index: 0, kind: input, shape index: {}]
  %s1 = inlined_call_operand.hbm [shape: f32[16,64], index: 1, kind: input, shape index: {}]
  %s2 = inlined_call_operand.vmem [shape: f32[1,64], index: 2, kind: input, shape index: {}]
  %s3 = inlined_call_operand.hbm [shape: f32[64,64], index: 3, kind: input, shape index: {}]
  %s4 = inlined_call_operand.vmem [shape: f32[1,64], index: 4, kind: input, shape index: {}]
  %s5 = inlined_call_operand.hbm [shape: f32[64,128], index: 5, kind: input, shape index: {}]
  %s6 = inlined_call_operand.vmem [shape: f32[1,128], index: 6, kind: input, shape index: {}]
  %s7 = inlined_call_operand.hbm [shape: f32[8,128], index: 7, kind: output, shape index: {}]
  %s8 = sld [smem:[#allocation0]]
  $region54: #{tpu_custom_call.1} parent=0
    _
  %s10 = ssub.s32 1, %s8
  %s11 = scalar_select 0, %s10, %s8
  $region1: #{tpu_custom_call.1} parent=0
    #allocation2 [shape = 'u8[4096]{0}', space=vmem, size = 0x1000, scoped, tag = 'input window, operand 0, single buffered']
    #allocation3 [shape = 's32[1]{0}', space=sflag, size = 0x4, scoped, tag = 'scoped memory for tpu_custom_call.1']
    #allocation4 [shape = 's32[1]{0}', space=sflag, size = 0x4, scoped, tag = 'scoped memory for tpu_custom_call.1']
    #allocation5 [shape = 'u8[8192]{0}', space=vmem, size = 0x2000, scoped, tag = 'input window, operand 1, single buffered']
    #allocation6 [shape = 's32[1]{0}', space=sflag, size = 0x4, scoped, tag = 'scoped memory for tpu_custom_call.1']
    #allocation7 [shape = 'u8[32768]{0}', space=vmem, size = 0x8000, scoped, tag = 'input window, operand 3, single buffered']
    #allocation8 [shape = 'u8[32768]{0}', space=vmem, size = 0x8000, scoped, tag = 'input window, operand 5, single buffered']
    #allocation9 [shape = 's32[1]{0}', space=sflag, size = 0x4, scoped, tag = 'scoped memory for tpu_custom_call.1']
    #allocation10 [shape = 'u8[4096]{0}', space=vmem, size = 0x1000, scoped, tag = 'output window, operand 0, single buffered']
    %12 = vsyncpa [#allocation3], 0
    %13 = vsyncpa [#allocation6], 0
    %14 = vsyncpa [#allocation9], 0
    %15 = vsyncpa [#allocation4], 0
    // Predicated region
    $region2: #{tpu_custom_call.1} parent=1 // pred_check
      _
    $region3: #{tpu_custom_call.1} parent=1 // pred_check_branch
      %17 = sbr.rel (0) target = $region5
    $region4: #{tpu_custom_call.1} parent=1 // pred_region
      %s19 = ssub.s32 128, 128
      %20 = vsyncadd [#allocation3], %s19
      %s22 = sshll.u32 [#allocation2], 4
      %s23 = int_to_ptr.vmem [resolvable:$true] %s22
      %25 = dma.hbm_to_vmem [thread:$0]  %s0, 128, %s23, [#allocation3]
    $region5: #{tpu_custom_call.1} parent=1 // pred_fallthru
      _
    // Predicated region
    $region6: #{tpu_custom_call.1} parent=1 // pred_check
      _
    $region7: #{tpu_custom_call.1} parent=1 // pred_check_branch
      %27 = sbr.rel (0) target = $region9
    $region8: #{tpu_custom_call.1} parent=1 // pred_region
      %s29 = ssub.s32 256, 256
      %30 = vsyncadd [#allocation6], %s29
      %s31 = sshll.u32 [#allocation5], 4
      %s32 = int_to_ptr.vmem [resolvable:$true] %s31
      %37 = dma.hbm_to_vmem [thread:$0]  %s1, 256, %s32, [#allocation6], 128, 128, 8
    $region9: #{tpu_custom_call.1} parent=1 // pred_fallthru
      _
    // Predicated region
    $region10: #{tpu_custom_call.1} parent=1 // pred_check
      _
    $region11: #{tpu_custom_call.1} parent=1 // pred_check_branch
      %39 = sbr.rel (0) target = $region13
    $region12: #{tpu_custom_call.1} parent=1 // pred_region
      _
    $region13: #{tpu_custom_call.1} parent=1 // pred_fallthru
      _
    // Predicated region
    $region14: #{tpu_custom_call.1} parent=1 // pred_check
      _
    $region15: #{tpu_custom_call.1} parent=1 // pred_check_branch
      %41 = sbr.rel (0) target = $region17
    $region16: #{tpu_custom_call.1} parent=1 // pred_region
      %s43 = ssub.s32 1024, 1024
      %44 = vsyncadd [#allocation6], %s43
      %s45 = sshll.u32 [#allocation7], 4
      %s46 = int_to_ptr.vmem [resolvable:$true] %s45
      %51 = dma.hbm_to_vmem [thread:$0]  %s3, 1024, %s46, [#allocation6], 128, 128, 8
    $region17: #{tpu_custom_call.1} parent=1 // pred_fallthru
      _
    // Predicated region
    $region18: #{tpu_custom_call.1} parent=1 // pred_check
      _
    $region19: #{tpu_custom_call.1} parent=1 // pred_check_branch
      %53 = sbr.rel (0) target = $region21
    $region20: #{tpu_custom_call.1} parent=1 // pred_region
      _
    $region21: #{tpu_custom_call.1} parent=1 // pred_fallthru
      _
    // Predicated region
    $region22: #{tpu_custom_call.1} parent=1 // pred_check
      _
    $region23: #{tpu_custom_call.1} parent=1 // pred_check_branch
      %55 = sbr.rel (0) target = $region25
    $region24: #{tpu_custom_call.1} parent=1 // pred_region
      %s57 = ssub.s32 1024, 1024
      %58 = vsyncadd [#allocation9], %s57
      %s59 = sshll.u32 [#allocation8], 4
      %s60 = int_to_ptr.vmem [resolvable:$true] %s59
      %65 = dma.hbm_to_vmem [thread:$0]  %s5, 1024, %s60, [#allocation9], 128, 128, 8
    $region25: #{tpu_custom_call.1} parent=1 // pred_fallthru
      _
    // Predicated region
    $region26: #{tpu_custom_call.1} parent=1 // pred_check
      _
    $region27: #{tpu_custom_call.1} parent=1 // pred_check_branch
      %67 = sbr.rel (0) target = $region29
    $region28: #{tpu_custom_call.1} parent=1 // pred_region
      _
    $region29: #{tpu_custom_call.1} parent=1 // pred_fallthru
      _
    // Predicated region
    $region30: #{tpu_custom_call.1} parent=1 // pred_check
      _
    $region31: #{tpu_custom_call.1} parent=1 // pred_check_branch
      %69 = sbr.rel (0) target = $region33
    $region32: #{tpu_custom_call.1} parent=1 // pred_region
      %70 = dma.done [#allocation3], 128
    $region33: #{tpu_custom_call.1} parent=1 // pred_fallthru
      _
    // Predicated region
    $region34: #{tpu_custom_call.1} parent=1 // pred_check
      _
    $region35: #{tpu_custom_call.1} parent=1 // pred_check_branch
      %72 = sbr.rel (0) target = $region37
    $region36: #{tpu_custom_call.1} parent=1 // pred_region
      %73 = dma.done [#allocation6], 256
    $region37: #{tpu_custom_call.1} parent=1 // pred_fallthru
      _
    // Predicated region
    $region38: #{tpu_custom_call.1} parent=1 // pred_check
      _
    $region39: #{tpu_custom_call.1} parent=1 // pred_check_branch
      %75 = sbr.rel (0) target = $region41
    $region40: #{tpu_custom_call.1} parent=1 // pred_region
      %76 = dma.done [#allocation6], 1024
    $region41: #{tpu_custom_call.1} parent=1 // pred_fallthru
      _
    // Predicated region
    $region42: #{tpu_custom_call.1} parent=1 // pred_check
      _
    $region43: #{tpu_custom_call.1} parent=1 // pred_check_branch
      %78 = sbr.rel (0) target = $region45
    $region44: #{tpu_custom_call.1} parent=1 // pred_region
      %79 = dma.done [#allocation9], 1024
    $region45: #{tpu_custom_call.1} parent=1 // pred_fallthru
      _
    %v80 = vld [vmem:[#allocation2] sm:$0xff]
    %v81 = vld [vmem:[#allocation5] sm:$0xff]
    %v82 = vld [vmem:[#allocation5 + $0x8] sm:$0xff]
    %v83 = vld [vmem:[%s2] sm:$0x1]
    %v85 = vlaneseq
    %v86 = vshrl.u32 %v85, 7
    %v87 = vsub.s32 0, %v86
    %v88 = vrot.slane %v83, %v87
    %vm90 = vcmask 130048
    %v92 = vsel %vm90, %v80, 0
    %94 = vmatprep.subr.mxu0 0.0
    %95 = vmatpush1.msra.mxu0 0.0
    %96 = vmatprep.subr.mxu0 0.0
    %97 = vmatpush1.msra.mxu0 0.0
    %98 = vmatprep.subr.mxu0 0.0
    %99 = vmatpush1.msra.mxu0 0.0
    %100 = vmatprep.subr.mxu0 0.0
    %101 = vmatpush1.msra.mxu0 0.0
    %102 = vmatprep.subr.mxu0 0.0
    %103 = vmatpush1.msra.mxu0 0.0
    %104 = vmatprep.subr.mxu0 0.0
    %105 = vmatpush1.msra.mxu0 0.0
    %106 = vmatprep.subr.mxu0 0.0
    %107 = vmatpush1.msra.mxu0 0.0
    %108 = vmatprep.subr.mxu0 0.0
    %109 = vmatpush1.msra.mxu0 0.0
    %110 = vmatprep.subr.mxu0 0.0
    %111 = vmatpush1.msra.mxu0 0.0
    %112 = vmatprep.subr.mxu0 0.0
    %113 = vmatpush1.msra.mxu0 0.0
    %114 = vmatprep.subr.mxu0 0.0
    %115 = vmatpush1.msra.mxu0 0.0
    %116 = vmatprep.subr.mxu0 0.0
    %117 = vmatpush1.msra.mxu0 0.0
    %118 = vmatprep.subr.mxu0 0.0
    %119 = vmatpush1.msra.mxu0 0.0
    %120 = vmatprep.subr.mxu0 0.0
    %121 = vmatpush1.msra.mxu0 0.0
    %122 = vmatprep.subr.mxu0 0.0
    %123 = vmatpush1.msra.mxu0 %v82
    %124 = vmatprep.subr.mxu0 0.0
    %125 = vmatpush1.msra.mxu0 %v81
    %126 = vmatprep.subr.mxu0 0.0
    %127 = vmatpush2.msra.mxu0 0.0
    %128 = vmatprep.subr.mxu0 0.0
    %129 = vmatpush2.msra.mxu0 0.0
    %130 = vmatprep.subr.mxu0 0.0
    %131 = vmatpush2.msra.mxu0 0.0
    %132 = vmatprep.subr.mxu0 0.0
    %133 = vmatpush2.msra.mxu0 0.0
    %134 = vmatprep.subr.mxu0 0.0
    %135 = vmatpush2.msra.mxu0 0.0
    %136 = vmatprep.subr.mxu0 0.0
    %137 = vmatpush2.msra.mxu0 0.0
    %138 = vmatprep.subr.mxu0 0.0
    %139 = vmatpush2.msra.mxu0 0.0
    %140 = vmatprep.subr.mxu0 0.0
    %141 = vmatpush2.msra.mxu0 0.0
    %142 = vmatprep.subr.mxu0 0.0
    %143 = vmatpush2.msra.mxu0 0.0
    %144 = vmatprep.subr.mxu0 0.0
    %145 = vmatpush2.msra.mxu0 0.0
    %146 = vmatprep.subr.mxu0 0.0
    %147 = vmatpush2.msra.mxu0 0.0
    %148 = vmatprep.subr.mxu0 0.0
    %149 = vmatpush2.msra.mxu0 0.0
    %150 = vmatprep.subr.mxu0 0.0
    %151 = vmatpush2.msra.mxu0 0.0
    %152 = vmatprep.subr.mxu0 0.0
    %153 = vmatpush2.msra.mxu0 0.0
    %154 = vmatprep.subr.mxu0 0.0
    %155 = vmatpush2.msra.mxu0 0.0
    %156 = vmatprep.subr.mxu0 0.0
    %157 = vmatpush2.msra.mxu0 0.0
    %158 = vmatprep.mubr.f32.mxu0 0.0
    %159 = vmatmul.mubr.f32.gmra.mxu0 %v92
    %v160 = vpop.f32.mrf.mxu0
    %v161 = vadd.f32 %v88, %v160
    %v162 = vpop.f32.mrf.mxu0
    %163 = vdwg.mxu0
    %v164 = vmax.f32 %v161, 0.0
    %v165 = vld [vmem:[#allocation7] sm:$0xff]
    %v166 = vld [vmem:[#allocation7 + $0x8] sm:$0xff]
    %v167 = vld [vmem:[#allocation7 + $0x10] sm:$0xff]
    %v168 = vld [vmem:[#allocation7 + $0x18] sm:$0xff]
    %v169 = vld [vmem:[#allocation7 + $0x20] sm:$0xff]
    %v170 = vld [vmem:[#allocation7 + $0x28] sm:$0xff]
    %v171 = vld [vmem:[#allocation7 + $0x30] sm:$0xff]
    %v172 = vld [vmem:[#allocation7 + $0x38] sm:$0xff]
    %v173 = vld [vmem:[%s4] sm:$0x1]
    %v175 = vlaneseq
    %v176 = vshrl.u32 %v175, 7
    %v177 = vsub.s32 0, %v176
    %v178 = vrot.slane %v173, %v177
    %vm180 = vcmask 523264
    %v182 = vsel %vm180, %v164, 0
    %184 = vmatprep.subr.mxu0 0.0
    %185 = vmatpush1.msra.mxu0 0.0
    %186 = vmatprep.subr.mxu0 0.0
    %187 = vmatpush1.msra.mxu0 0.0
    %188 = vmatprep.subr.mxu0 0.0
    %189 = vmatpush1.msra.mxu0 0.0
    %190 = vmatprep.subr.mxu0 0.0
    %191 = vmatpush1.msra.mxu0 0.0
    %192 = vmatprep.subr.mxu0 0.0
    %193 = vmatpush1.msra.mxu0 0.0
    %194 = vmatprep.subr.mxu0 0.0
    %195 = vmatpush1.msra.mxu0 0.0
    %196 = vmatprep.subr.mxu0 0.0
    %197 = vmatpush1.msra.mxu0 0.0
    %198 = vmatprep.subr.mxu0 0.0
    %199 = vmatpush1.msra.mxu0 0.0
    %200 = vmatprep.subr.mxu0 0.0
    %201 = vmatpush1.msra.mxu0 %v172
    %202 = vmatprep.subr.mxu0 0.0
    %203 = vmatpush1.msra.mxu0 %v171
    %204 = vmatprep.subr.mxu0 0.0
    %205 = vmatpush1.msra.mxu0 %v170
    %206 = vmatprep.subr.mxu0 0.0
    %207 = vmatpush1.msra.mxu0 %v169
    %208 = vmatprep.subr.mxu0 0.0
    %209 = vmatpush1.msra.mxu0 %v168
    %210 = vmatprep.subr.mxu0 0.0
    %211 = vmatpush1.msra.mxu0 %v167
    %212 = vmatprep.subr.mxu0 0.0
    %213 = vmatpush1.msra.mxu0 %v166
    %214 = vmatprep.subr.mxu0 0.0
    %215 = vmatpush1.msra.mxu0 %v165
    %216 = vmatprep.subr.mxu0 0.0
    %217 = vmatpush2.msra.mxu0 0.0
    %218 = vmatprep.subr.mxu0 0.0
    %219 = vmatpush2.msra.mxu0 0.0
    %220 = vmatprep.subr.mxu0 0.0
    %221 = vmatpush2.msra.mxu0 0.0
    %222 = vmatprep.subr.mxu0 0.0
    %223 = vmatpush2.msra.mxu0 0.0
    %224 = vmatprep.subr.mxu0 0.0
    %225 = vmatpush2.msra.mxu0 0.0
    %226 = vmatprep.subr.mxu0 0.0
    %227 = vmatpush2.msra.mxu0 0.0
    %228 = vmatprep.subr.mxu0 0.0
    %229 = vmatpush2.msra.mxu0 0.0
    %230 = vmatprep.subr.mxu0 0.0
    %231 = vmatpush2.msra.mxu0 0.0
    %232 = vmatprep.subr.mxu0 0.0
    %233 = vmatpush2.msra.mxu0 0.0
    %234 = vmatprep.subr.mxu0 0.0
    %235 = vmatpush2.msra.mxu0 0.0
    %236 = vmatprep.subr.mxu0 0.0
    %237 = vmatpush2.msra.mxu0 0.0
    %238 = vmatprep.subr.mxu0 0.0
    %239 = vmatpush2.msra.mxu0 0.0
    %240 = vmatprep.subr.mxu0 0.0
    %241 = vmatpush2.msra.mxu0 0.0
    %242 = vmatprep.subr.mxu0 0.0
    %243 = vmatpush2.msra.mxu0 0.0
    %244 = vmatprep.subr.mxu0 0.0
    %245 = vmatpush2.msra.mxu0 0.0
    %246 = vmatprep.subr.mxu0 0.0
    %247 = vmatpush2.msra.mxu0 0.0
    %248 = vmatprep.mubr.f32.mxu0 0.0
    %249 = vmatmul.mubr.f32.gmra.mxu0 %v182
    %v250 = vpop.f32.mrf.mxu0
    %v251 = vadd.f32 %v178, %v250
    %v252 = vpop.f32.mrf.mxu0
    %253 = vdwg.mxu0
    %v254 = vmax.f32 %v251, 0.0
    %v255 = vld [vmem:[#allocation8] sm:$0xff]
    %v256 = vld [vmem:[#allocation8 + $0x8] sm:$0xff]
    %v257 = vld [vmem:[#allocation8 + $0x10] sm:$0xff]
    %v258 = vld [vmem:[#allocation8 + $0x18] sm:$0xff]
    %v259 = vld [vmem:[#allocation8 + $0x20] sm:$0xff]
    %v260 = vld [vmem:[#allocation8 + $0x28] sm:$0xff]
    %v261 = vld [vmem:[#allocation8 + $0x30] sm:$0xff]
    %v262 = vld [vmem:[#allocation8 + $0x38] sm:$0xff]
    %v263 = vld [vmem:[%s6] sm:$0x1]
    %v265 = vlaneseq
    %v266 = vshrl.u32 %v265, 7
    %v267 = vsub.s32 0, %v266
    %v268 = vrot.slane %v263, %v267
    %v271 = vsel %vm180, %v254, 0
    %273 = vmatprep.subr.mxu0 0.0
    %274 = vmatpush1.msra.mxu0 0.0
    %275 = vmatprep.subr.mxu0 0.0
    %276 = vmatpush1.msra.mxu0 0.0
    %277 = vmatprep.subr.mxu0 0.0
    %278 = vmatpush1.msra.mxu0 0.0
    %279 = vmatprep.subr.mxu0 0.0
    %280 = vmatpush1.msra.mxu0 0.0
    %281 = vmatprep.subr.mxu0 0.0
    %282 = vmatpush1.msra.mxu0 0.0
    %283 = vmatprep.subr.mxu0 0.0
    %284 = vmatpush1.msra.mxu0 0.0
    %285 = vmatprep.subr.mxu0 0.0
    %286 = vmatpush1.msra.mxu0 0.0
    %287 = vmatprep.subr.mxu0 0.0
    %288 = vmatpush1.msra.mxu0 0.0
    %289 = vmatprep.subr.mxu0 0.0
    %290 = vmatpush1.msra.mxu0 %v262
    %291 = vmatprep.subr.mxu0 0.0
    %292 = vmatpush1.msra.mxu0 %v261
    %293 = vmatprep.subr.mxu0 0.0
    %294 = vmatpush1.msra.mxu0 %v260
    %295 = vmatprep.subr.mxu0 0.0
    %296 = vmatpush1.msra.mxu0 %v259
    %297 = vmatprep.subr.mxu0 0.0
    %298 = vmatpush1.msra.mxu0 %v258
    %299 = vmatprep.subr.mxu0 0.0
    %300 = vmatpush1.msra.mxu0 %v257
    %301 = vmatprep.subr.mxu0 0.0
    %302 = vmatpush1.msra.mxu0 %v256
    %303 = vmatprep.subr.mxu0 0.0
    %304 = vmatpush1.msra.mxu0 %v255
    %305 = vmatprep.subr.mxu0 0.0
    %306 = vmatpush2.msra.mxu0 0.0
    %307 = vmatprep.subr.mxu0 0.0
    %308 = vmatpush2.msra.mxu0 0.0
    %309 = vmatprep.subr.mxu0 0.0
    %310 = vmatpush2.msra.mxu0 0.0
    %311 = vmatprep.subr.mxu0 0.0
    %312 = vmatpush2.msra.mxu0 0.0
    %313 = vmatprep.subr.mxu0 0.0
    %314 = vmatpush2.msra.mxu0 0.0
    %315 = vmatprep.subr.mxu0 0.0
    %316 = vmatpush2.msra.mxu0 0.0
    %317 = vmatprep.subr.mxu0 0.0
    %318 = vmatpush2.msra.mxu0 0.0
    %319 = vmatprep.subr.mxu0 0.0
    %320 = vmatpush2.msra.mxu0 0.0
    %321 = vmatprep.subr.mxu0 0.0
    %322 = vmatpush2.msra.mxu0 0.0
    %323 = vmatprep.subr.mxu0 0.0
    %324 = vmatpush2.msra.mxu0 0.0
    %325 = vmatprep.subr.mxu0 0.0
    %326 = vmatpush2.msra.mxu0 0.0
    %327 = vmatprep.subr.mxu0 0.0
    %328 = vmatpush2.msra.mxu0 0.0
    %329 = vmatprep.subr.mxu0 0.0
    %330 = vmatpush2.msra.mxu0 0.0
    %331 = vmatprep.subr.mxu0 0.0
    %332 = vmatpush2.msra.mxu0 0.0
    %333 = vmatprep.subr.mxu0 0.0
    %334 = vmatpush2.msra.mxu0 0.0
    %335 = vmatprep.subr.mxu0 0.0
    %336 = vmatpush2.msra.mxu0 0.0
    %337 = vmatprep.mubr.f32.mxu0 0.0
    %338 = vmatmul.mubr.f32.gmra.mxu0 %v271
    %v339 = vpop.f32.mrf.mxu0
    %v340 = vadd.f32 %v268, %v339
    %v341 = vpop.f32.mrf.mxu0
    %342 = vdwg.mxu0
    %v343 = vlaneseq
    %v344 = vand.u32 %v343, 127
    %vm345 = vcmp.lt.s32.totalorder %v344, 6
    %v346 = vsel %vm345, %v340, -1e+30
    %347 = vmax.xlane.f32.xlu0 %v346
    %v348 = vpop.xlane.xlu0 %347
    %v349 = vsub.f32 %v346, %v348
    %v350 = vmul.f32 %v349, 1.442695
    %v351 = vpow.pop %v350
    %352 = vadd.xlane.f32.xlu0 %v351
    %v353 = vpop.xlane.xlu0 %352
    %v354 = vrcp.pop %v353
    %v355 = vmul.f32 %v351, %v354
    %356 = vst [vmem:[#allocation10] sm:$0xff] %v355
    // Predicated region
    $region46: #{tpu_custom_call.1} parent=1 // pred_check
      _
    $region47: #{tpu_custom_call.1} parent=1 // pred_check_branch
      %358 = sbr.rel (0) target = $region49
    $region48: #{tpu_custom_call.1} parent=1 // pred_region
      %s360 = ssub.s32 128, 128
      %361 = vsyncadd [#allocation4], %s360
      %s363 = sshll.u32 [#allocation10], 4
      %s364 = int_to_ptr.vmem [resolvable:$true] %s363
      %366 = dma.vmem_to_hbm [thread:$0]  %s364, 128, %s7, [#allocation4]
    $region49: #{tpu_custom_call.1} parent=1 // pred_fallthru
      _
    // Predicated region
    $region50: #{tpu_custom_call.1} parent=1 // pred_check
      _
    $region51: #{tpu_custom_call.1} parent=1 // pred_check_branch
      %368 = sbr.rel (0) target = $region53
    $region52: #{tpu_custom_call.1} parent=1 // pred_region
      %369 = dma.done [#allocation4], 128
    $region53: #{tpu_custom_call.1} parent=1 // pred_fallthru
      _
    %370 = vsyncpa [#allocation3], 1
    %371 = vsyncpa [#allocation6], 1
    %372 = vsyncpa [#allocation9], 1
    %373 = vsyncpa [#allocation4], 1

</llo_original>
